<compile_context>
chip_gen: v5e
topology: v5e:2x2
jax: 0.10.0
libtpu: 0.0.40
codegen_flags: <defaults>
</compile_context>

<pallas_src>
import numpy as np
import jax
import jax.numpy as jnp
from jax.experimental import pallas as pl
from jax.experimental.pallas import tpu as pltpu

LAT_DIM = 2
N_CHANNELS = 3
N_FEATS = 4
SEED = 100


def _round_up(x, m):
    return ((x + m - 1) // m) * m


def make_generator_weights(lat_dim=LAT_DIM, n_channels=N_CHANNELS,
                           n_feats=N_FEATS, seed=SEED):
    """Deterministic replication of GeneratorUniform.__init__ weight setup.

    Returns:
      W_stack : (C, n_feats, lat_dim) -- per-channel nn.Linear weights (reference).
      W_kernel: (C, lat_dim, n_feats) -- pre-transposed weights consumed by the
                                         kernel (no in-kernel transpose).
    """
    np.random.seed(seed)
    ws = []
    for _ in range(n_channels):
        w_ = np.random.uniform(-1, 1, (n_feats, lat_dim))
        u, s, vt = np.linalg.svd(w_, full_matrices=False)
        w = u if n_feats >= lat_dim else vt
        ws.append(w.astype(np.float32))
    w_stack = np.stack(ws, axis=0)                       # (C, nf, lat)
    w_kernel = np.transpose(w_stack, (0, 2, 1)).copy()   # (C, lat, nf)
    return jnp.asarray(w_stack), jnp.asarray(w_kernel)


def _generator_kernel(z_ref, w_ref, *o_refs):
    # z_ref: (tile, lat); w_ref: (C, lat, nf), resident; o_refs[c]: (tile, nf).
    z = z_ref[...]
    w = w_ref[...]
    lat = w.shape[1]                        # compile-time constant (2)
    for c, o_ref in enumerate(o_refs):      # unrolled at trace time
        # K = lat = 2 contraction as VPU broadcast multiply-adds; no MXU,
        # no in-kernel transpose.  Channel separation happens at writeback.
        acc = z[:, 0:1] * w[c, 0:1, :]
        for k in range(1, lat):
            acc = acc + z[:, k:k + 1] * w[c, k:k + 1, :]
        o_ref[...] = acc.astype(o_ref.dtype)


def _pick_tile_and_vmem(requested_tile, n_channels):
    """Generation-aware tile cap + scoped-VMEM limit.

    Each double-buffered row costs ~512 B of lane-padded VMEM per block
    (the (tile, 2) z block plus one (tile, nf) block per channel output all
    pad their last dim to 128 f32 lanes).
    """
    try:
        vmem_cap = int(pltpu.get_tpu_info().vmem_capacity_bytes)
    except Exception:
        vmem_cap = 64 << 20                 # conservative: v7x per-TC VMEM
    bytes_per_row = 2 * 512 * (1 + n_channels)      # double-buffered
    budget = min(vmem_cap // 2, 56 << 20)           # leave headroom
    max_rows = max(512, (budget // bytes_per_row) // 512 * 512)
    tile = max(8, (min(requested_tile, max_rows) // 8) * 8)
    vmem_limit = int(min(vmem_cap, budget + (32 << 20)))
    return tile, vmem_limit


def generator_uniform_forward(z, W_kernel, *, tile_n=16384,
                              min_rows_for_kernel=2048):
    """Forward pass of GeneratorUniform.

    z        : (N, lat_dim) array (or a list of such arrays, like the module).
    W_kernel : (C, lat_dim, n_feats) pre-transposed weights.
    Returns a list of C arrays, each (N, n_feats), matching the PyTorch module.
    """
    if isinstance(z, list):
        return [generator_uniform_forward(zi, W_kernel, tile_n=tile_n,
                                          min_rows_for_kernel=min_rows_for_kernel)
                for zi in z]
    z = jnp.asarray(z, dtype=jnp.float32)
    c, lat, nf = W_kernel.shape
    assert z.ndim == 2 and z.shape[1] == lat
    n = z.shape[0]

    # Small-N bypass: fixed launch + pipeline spin-up exceeds the actual work.
    if n < min_rows_for_kernel:
        return [jnp.einsum("nl,lf->nf", z, W_kernel[i]) for i in range(c)]

    # Generation-aware tile (fits scoped VMEM, keeps a multi-step grid).
    tile, vmem_limit = _pick_tile_and_vmem(tile_n, c)

    # Pad N up to a tile multiple -- never fall back to one giant block.
    n8 = _round_up(n, 8)
    if n8 <= tile:
        tile = n8
        n_pad = n8
    else:
        n_pad = _round_up(n, tile)
    grid = (n_pad // tile,)
    zp = z if n_pad == n else jnp.pad(z, ((0, n_pad - n), (0, 0)))

    outs = pl.pallas_call(
        _generator_kernel,
        out_shape=tuple(jax.ShapeDtypeStruct((n_pad, nf), jnp.float32)
                        for _ in range(c)),
        grid_spec=pl.GridSpec(
            grid=grid,
            in_specs=[
                pl.BlockSpec((tile, lat), lambda i: (i, 0)),      # z tile
                pl.BlockSpec((c, lat, nf), lambda i: (0, 0, 0)),  # weights, resident
            ],
            out_specs=tuple(pl.BlockSpec((tile, nf), lambda i: (i, 0))
                            for _ in range(c)),
        ),
        compiler_params=pltpu.CompilerParams(
            dimension_semantics=("parallel",),
            vmem_limit_bytes=vmem_limit),
        cost_estimate=pl.CostEstimate(
            flops=2 * lat * n_pad * c * nf,
            transcendentals=0,
            bytes_accessed=4 * n_pad * (lat + c * nf)),
    )(zp, W_kernel.astype(jnp.float32))

    if n_pad == n:
        return list(outs)
    return [o[:n] for o in outs]


def generator_uniform_ref(z, W_stack):
    """Pure-JAX reference (per-channel nn.Linear, no bias)."""
    z = jnp.asarray(z, dtype=jnp.float32)
    return [jnp.dot(z, W_stack[i].T) for i in range(W_stack.shape[0])]


def _check(z, W_stack, W_kernel, **kwargs):
    obs = generator_uniform_forward(z, W_kernel, **kwargs)
    obs = [jax.block_until_ready(o) for o in obs]
    ref = generator_uniform_ref(z, W_stack)
    assert len(obs) == W_stack.shape[0]
    for o, r in zip(obs, ref):
        assert o.shape == (np.asarray(z).shape[0], N_FEATS)
        np.testing.assert_allclose(np.asarray(o), np.asarray(r),
                                   rtol=1e-5, atol=1e-5)


if __name__ == "__main__":
    W_stack, W_kernel = make_generator_weights()

    key = jax.random.PRNGKey(0)
    k0, k1, k2, k3 = jax.random.split(key, 4)

    # 1. Small batch, force the kernel path (single full-extent block).
    z_small = jax.random.normal(k0, (8, LAT_DIM), dtype=jnp.float32)
    _check(z_small, W_stack, W_kernel, min_rows_for_kernel=0)

    # 2. Multi-step pipelined grid (tile override), divisible N.
    z_tiled = jax.random.normal(k1, (4096, LAT_DIM), dtype=jnp.float32)
    _check(z_tiled, W_stack, W_kernel, tile_n=1024, min_rows_for_kernel=0)

    # 3. Non-divisible N -> wrapper pads up to a tile multiple (no giant block).
    z_ragged = jax.random.normal(k2, (1000, LAT_DIM), dtype=jnp.float32)
    _check(z_ragged, W_stack, W_kernel, tile_n=256, min_rows_for_kernel=0)

    # 4. Default path (generation-aware tile, kernel engaged above threshold).
    z_big = jax.random.normal(k3, (4096, LAT_DIM), dtype=jnp.float32)
    _check(z_big, W_stack, W_kernel)

    # 5. List-of-inputs contract (module supports it) + small-N JAX bypass.
    list_out = generator_uniform_forward([np.asarray(z_small), z_small], W_kernel)
    for per_input, zi in zip(list_out, [z_small, z_small]):
        for o, r in zip(per_input, generator_uniform_ref(zi, W_stack)):
            np.testing.assert_allclose(np.asarray(jax.block_until_ready(o)),
                                       np.asarray(r), rtol=1e-5, atol=1e-5)

    print("KERNEL_OK")
</pallas_src>

<mosaic_0001>
module attributes {stable_mosaic.version = 11 : i64} {
  func.func @_generator_kernel(%arg0: i32, %arg1: memref<8x2xf32, #tpu.memory_space<vmem>>, %arg2: memref<3x2x4xf32, #tpu.memory_space<vmem>>, %arg3: memref<8x4xf32, #tpu.memory_space<vmem>>, %arg4: memref<8x4xf32, #tpu.memory_space<vmem>>, %arg5: memref<8x4xf32, #tpu.memory_space<vmem>>) attributes {dimension_semantics = [#tpu.dimension_semantics<parallel>], iteration_bounds = array<i64: 1>, scalar_prefetch = 0 : i64, scratch_operands = 0 : i64, tpu.core_type = #tpu.core_type<tc>, window_params = [{transform_indices = @transform_0, window_bounds = array<i64: 8, 2>}, {pipeline_mode = #tpu.pipeline_mode<synchronous>, transform_indices = @transform_1, window_bounds = array<i64: 3, 2, 4>}, {transform_indices = @transform_2, window_bounds = array<i64: 8, 4>}, {transform_indices = @transform_3, window_bounds = array<i64: 8, 4>}, {transform_indices = @transform_4, window_bounds = array<i64: 8, 4>}]} {
    %c0 = arith.constant 0 : index
    %c0_0 = arith.constant 0 : index
    %0 = vector.load %arg1[%c0, %c0_0] : memref<8x2xf32, #tpu.memory_space<vmem>>, vector<8x2xf32>
    %c0_1 = arith.constant 0 : index
    %c0_2 = arith.constant 0 : index
    %c0_3 = arith.constant 0 : index
    %1 = vector.load %arg2[%c0_1, %c0_2, %c0_3] : memref<3x2x4xf32, #tpu.memory_space<vmem>>, vector<3x2x4xf32>
    %2 = vector.extract_strided_slice %0 {offsets = [0, 0], sizes = [8, 1], strides = [1, 1]} : vector<8x2xf32> to vector<8x1xf32>
    %3 = vector.extract_strided_slice %1 {offsets = [0, 0, 0], sizes = [1, 1, 4], strides = [1, 1, 1]} : vector<3x2x4xf32> to vector<1x1x4xf32>
    %4 = vector.shape_cast %3 : vector<1x1x4xf32> to vector<1x4xf32>
    %5 = vector.broadcast %2 : vector<8x1xf32> to vector<8x4xf32>
    %6 = vector.broadcast %4 : vector<1x4xf32> to vector<8x4xf32>
    %7 = arith.mulf %5, %6 : vector<8x4xf32>
    %8 = vector.extract_strided_slice %0 {offsets = [0, 1], sizes = [8, 1], strides = [1, 1]} : vector<8x2xf32> to vector<8x1xf32>
    %9 = vector.extract_strided_slice %1 {offsets = [0, 1, 0], sizes = [1, 1, 4], strides = [1, 1, 1]} : vector<3x2x4xf32> to vector<1x1x4xf32>
    %10 = vector.shape_cast %9 : vector<1x1x4xf32> to vector<1x4xf32>
    %11 = vector.broadcast %8 : vector<8x1xf32> to vector<8x4xf32>
    %12 = vector.broadcast %10 : vector<1x4xf32> to vector<8x4xf32>
    %13 = arith.mulf %11, %12 : vector<8x4xf32>
    %14 = arith.addf %7, %13 : vector<8x4xf32>
    %c0_4 = arith.constant 0 : index
    %c0_5 = arith.constant 0 : index
    %15 = vector.load %arg3[%c0_4, %c0_5] : memref<8x4xf32, #tpu.memory_space<vmem>>, vector<8x4xf32>
    tpu.vector_store %arg3[%c0_4, %c0_5], %14 {strides = array<i32>} : memref<8x4xf32, #tpu.memory_space<vmem>>, vector<8x4xf32>,
    %16 = vector.extract_strided_slice %0 {offsets = [0, 0], sizes = [8, 1], strides = [1, 1]} : vector<8x2xf32> to vector<8x1xf32>
    %17 = vector.extract_strided_slice %1 {offsets = [1, 0, 0], sizes = [1, 1, 4], strides = [1, 1, 1]} : vector<3x2x4xf32> to vector<1x1x4xf32>
    %18 = vector.shape_cast %17 : vector<1x1x4xf32> to vector<1x4xf32>
    %19 = vector.broadcast %16 : vector<8x1xf32> to vector<8x4xf32>
    %20 = vector.broadcast %18 : vector<1x4xf32> to vector<8x4xf32>
    %21 = arith.mulf %19, %20 : vector<8x4xf32>
    %22 = vector.extract_strided_slice %0 {offsets = [0, 1], sizes = [8, 1], strides = [1, 1]} : vector<8x2xf32> to vector<8x1xf32>
    %23 = vector.extract_strided_slice %1 {offsets = [1, 1, 0], sizes = [1, 1, 4], strides = [1, 1, 1]} : vector<3x2x4xf32> to vector<1x1x4xf32>
    %24 = vector.shape_cast %23 : vector<1x1x4xf32> to vector<1x4xf32>
    %25 = vector.broadcast %22 : vector<8x1xf32> to vector<8x4xf32>
    %26 = vector.broadcast %24 : vector<1x4xf32> to vector<8x4xf32>
    %27 = arith.mulf %25, %26 : vector<8x4xf32>
    %28 = arith.addf %21, %27 : vector<8x4xf32>
    %c0_6 = arith.constant 0 : index
    %c0_7 = arith.constant 0 : index
    %29 = vector.load %arg4[%c0_6, %c0_7] : memref<8x4xf32, #tpu.memory_space<vmem>>, vector<8x4xf32>
    tpu.vector_store %arg4[%c0_6, %c0_7], %28 {strides = array<i32>} : memref<8x4xf32, #tpu.memory_space<vmem>>, vector<8x4xf32>,
    %30 = vector.extract_strided_slice %0 {offsets = [0, 0], sizes = [8, 1], strides = [1, 1]} : vector<8x2xf32> to vector<8x1xf32>
    %31 = vector.extract_strided_slice %1 {offsets = [2, 0, 0], sizes = [1, 1, 4], strides = [1, 1, 1]} : vector<3x2x4xf32> to vector<1x1x4xf32>
    %32 = vector.shape_cast %31 : vector<1x1x4xf32> to vector<1x4xf32>
    %33 = vector.broadcast %30 : vector<8x1xf32> to vector<8x4xf32>
    %34 = vector.broadcast %32 : vector<1x4xf32> to vector<8x4xf32>
    %35 = arith.mulf %33, %34 : vector<8x4xf32>
    %36 = vector.extract_strided_slice %0 {offsets = [0, 1], sizes = [8, 1], strides = [1, 1]} : vector<8x2xf32> to vector<8x1xf32>
    %37 = vector.extract_strided_slice %1 {offsets = [2, 1, 0], sizes = [1, 1, 4], strides = [1, 1, 1]} : vector<3x2x4xf32> to vector<1x1x4xf32>
    %38 = vector.shape_cast %37 : vector<1x1x4xf32> to vector<1x4xf32>
    %39 = vector.broadcast %36 : vector<8x1xf32> to vector<8x4xf32>
    %40 = vector.broadcast %38 : vector<1x4xf32> to vector<8x4xf32>
    %41 = arith.mulf %39, %40 : vector<8x4xf32>
    %42 = arith.addf %35, %41 : vector<8x4xf32>
    %c0_8 = arith.constant 0 : index
    %c0_9 = arith.constant 0 : index
    %43 = vector.load %arg5[%c0_8, %c0_9] : memref<8x4xf32, #tpu.memory_space<vmem>>, vector<8x4xf32>
    tpu.vector_store %arg5[%c0_8, %c0_9], %42 {strides = array<i32>} : memref<8x4xf32, #tpu.memory_space<vmem>>, vector<8x4xf32>,
    return
  }
  func.func @transform_0(%arg0: i32) -> (i32, i32) {
    %c0_i32 = arith.constant 0 : i32
    %c0_i32_0 = arith.constant 0 : i32
    return %arg0, %c0_i32 : i32, i32
  }
  func.func @transform_1(%arg0: i32) -> (i32, i32, i32) {
    %c0_i32 = arith.constant 0 : i32
    %c0_i32_0 = arith.constant 0 : i32
    %c0_i32_1 = arith.constant 0 : i32
    %c0_i32_2 = arith.constant 0 : i32
    return %c0_i32, %c0_i32_0, %c0_i32_1 : i32, i32, i32
  }
  func.func @transform_2(%arg0: i32) -> (i32, i32) {
    %c0_i32 = arith.constant 0 : i32
    %c0_i32_0 = arith.constant 0 : i32
    return %arg0, %c0_i32 : i32, i32
  }
  func.func @transform_3(%arg0: i32) -> (i32, i32) {
    %c0_i32 = arith.constant 0 : i32
    %c0_i32_0 = arith.constant 0 : i32
    return %arg0, %c0_i32 : i32, i32
  }
  func.func @transform_4(%arg0: i32) -> (i32, i32) {
    %c0_i32 = arith.constant 0 : i32
    %c0_i32_0 = arith.constant 0 : i32
    return %arg0, %c0_i32 : i32, i32
  }
}

</mosaic_0001>

<llo_original>
// kernel: tpu_custom_call.1
$region0: #{tpu_custom_call.1}
  #allocation0 [shape = 'u32[]', space=smem, size = 0x4, offset = 0x4, fixed_abs, tag = 'smem constant byte address 0x4 - core index']
  #allocation1 [shape = 'u32[72,128]{1,0:T(1,128)}', space=vmem, size = 0x9000, scoped, tag = 'internal scratch']
  %s0 = inlined_call_operand.vmem [shape: f32[8,2], index: 0, kind: input, shape index: {}]
  %s1 = inlined_call_operand.vmem [shape: f32[3,2,4], index: 1, kind: input, shape index: {}]
  %s2 = inlined_call_operand.vmem [shape: f32[8,4], index: 2, kind: output, shape index: {0}]
  %s3 = inlined_call_operand.vmem [shape: f32[8,4], index: 3, kind: output, shape index: {1}]
  %s4 = inlined_call_operand.vmem [shape: f32[8,4], index: 4, kind: output, shape index: {2}]
  %5 = xla_tuple %s2, %s3, %s4
  %s6 = sld [smem:[#allocation0]]
  $region34: #{tpu_custom_call.1} parent=0
    _
  %s8 = ssub.s32 1, %s6
  %s9 = scalar_select 0, %s8, %s6
  // Predicated region
  $region2: #{tpu_custom_call.1} parent=0 // pred_check
    _
  $region3: #{tpu_custom_call.1} parent=0 // pred_check_branch
    %11 = sbr.rel (0) target = $region5
  $region4: #{tpu_custom_call.1} parent=0 // pred_region
    _
  $region5: #{tpu_custom_call.1} parent=0 // pred_fallthru
    _
  // Predicated region
  $region6: #{tpu_custom_call.1} parent=0 // pred_check
    _
  $region7: #{tpu_custom_call.1} parent=0 // pred_check_branch
    %13 = sbr.rel (0) target = $region9
  $region8: #{tpu_custom_call.1} parent=0 // pred_region
    _
  $region9: #{tpu_custom_call.1} parent=0 // pred_fallthru
    _
  %v14 = vld [vmem:[%s0] sm:$0xff]
  %v15 = vld [vmem:[%s1] sm:$0x3]
  %v16 = vld [vmem:[%s1 + $0x2] sm:$0x3]
  %v17 = vld [vmem:[%s1 + $0x4] sm:$0x3]
  %19 = vset.pattern.permute.xlu0 0
  %20 = vperm.xlu0 %19, %v14
  %v21 = vpop.permute.xlu0 %20
  %v23 = vperm.slane %v15, 0
  %v24 = vmul.f32 %v21, %v23
  %25 = vset.pattern.permute.xlu0 1
  %26 = vperm.xlu0 %25, %v14
  %v27 = vpop.permute.xlu0 %26
  %v29 = vperm.slane %v15, 1
  %v30 = vmul.f32 %v27, %v29
  %v31 = vadd.f32 %v24, %v30
  %vm32 = vcmask 31744
  %33 = vst.msk [vmem:[%s2] sm:$0xff] %vm32, %v31
  %v34 = vperm.slane %v16, 0
  %v35 = vmul.f32 %v21, %v34
  %v36 = vperm.slane %v16, 1
  %v37 = vmul.f32 %v27, %v36
  %v38 = vadd.f32 %v35, %v37
  %39 = vst.msk [vmem:[%s3] sm:$0xff] %vm32, %v38
  %v40 = vperm.slane %v17, 0
  %v41 = vmul.f32 %v21, %v40
  %v42 = vperm.slane %v17, 1
  %v43 = vmul.f32 %v27, %v42
  %v44 = vadd.f32 %v41, %v43
  %45 = vst.msk [vmem:[%s4] sm:$0xff] %vm32, %v44
  // Predicated region
  $region10: #{tpu_custom_call.1} parent=0 // pred_check
    _
  $region11: #{tpu_custom_call.1} parent=0 // pred_check_branch
    %47 = sbr.rel (0) target = $region13
  $region12: #{tpu_custom_call.1} parent=0 // pred_region
    _
  $region13: #{tpu_custom_call.1} parent=0 // pred_fallthru
    _
  // Predicated region
  $region14: #{tpu_custom_call.1} parent=0 // pred_check
    _
  $region15: #{tpu_custom_call.1} parent=0 // pred_check_branch
    %49 = sbr.rel (0) target = $region17
  $region16: #{tpu_custom_call.1} parent=0 // pred_region
    _
  $region17: #{tpu_custom_call.1} parent=0 // pred_fallthru
    _
  // Predicated region
  $region18: #{tpu_custom_call.1} parent=0 // pred_check
    _
  $region19: #{tpu_custom_call.1} parent=0 // pred_check_branch
    %51 = sbr.rel (0) target = $region21
  $region20: #{tpu_custom_call.1} parent=0 // pred_region
    _
  $region21: #{tpu_custom_call.1} parent=0 // pred_fallthru
    _
  // Predicated region
  $region22: #{tpu_custom_call.1} parent=0 // pred_check
    _
  $region23: #{tpu_custom_call.1} parent=0 // pred_check_branch
    %53 = sbr.rel (0) target = $region25
  $region24: #{tpu_custom_call.1} parent=0 // pred_region
    _
  $region25: #{tpu_custom_call.1} parent=0 // pred_fallthru
    _
  // Predicated region
  $region26: #{tpu_custom_call.1} parent=0 // pred_check
    _
  $region27: #{tpu_custom_call.1} parent=0 // pred_check_branch
    %55 = sbr.rel (0) target = $region29
  $region28: #{tpu_custom_call.1} parent=0 // pred_region
    _
  $region29: #{tpu_custom_call.1} parent=0 // pred_fallthru
    _
  // Predicated region
  $region30: #{tpu_custom_call.1} parent=0 // pred_check
    _
  $region31: #{tpu_custom_call.1} parent=0 // pred_check_branch
    %57 = sbr.rel (0) target = $region33
  $region32: #{tpu_custom_call.1} parent=0 // pred_region
    _
  $region33: #{tpu_custom_call.1} parent=0 // pred_fallthru
    _

</llo_original>
